<compile_context>
chip_gen: v7x
topology: tpu7x:2x2x1
jax: 0.10.0
libtpu: 0.0.40
codegen_flags: <defaults>
</compile_context>

<pallas_src>
import jax
import jax.numpy as jnp
import numpy as np
from jax.experimental import pallas as pl
from jax.experimental.pallas import tpu as pltpu


def _penc2d_kernel(tabx_ref, taby_ref, o_ref):
    """One (1, C, tx, Y) output block of the positional encoding.

    tabx_ref: (C, tx, 1) x-contribution (zero rows for y-based channels)
    taby_ref: (C, 1, Y)  y-contribution (zero rows for x-based channels)
    Exactly one contribution is nonzero per channel, so a single broadcast add
    reproduces the interleaved sin/cos encoding: one VALU add + cast per
    element, no transcendentals, no transposes, no iota -> store bound.
    """
    o_ref[...] = (tabx_ref[...] + taby_ref[...])[None].astype(o_ref.dtype)


def _build_tables(org_channels, xdim, ydim):
    """Host-side per-channel tables (the only transcendentals anywhere)."""
    ch_int = int(np.ceil(org_channels / 4) * 2)
    ch = np.arange(org_channels)
    is_y = ch >= ch_int                      # channels [ch_int, C) use y
    loc = ch - np.where(is_y, ch_int, 0)     # position within its block
    freq = 10000.0 ** (-(2.0 * (loc // 2)) / float(ch_int))   # (C,)
    is_cos = (loc % 2) == 1                  # even -> sin, odd -> cos
    pos_x = np.arange(xdim, dtype=np.float64)
    pos_y = np.arange(ydim, dtype=np.float64)
    ang_x = freq[:, None] * pos_x[None, :]                     # (C, X)
    ang_y = freq[:, None] * pos_y[None, :]                     # (C, Y)
    val_x = np.where(is_cos[:, None], np.cos(ang_x), np.sin(ang_x))
    val_y = np.where(is_cos[:, None], np.cos(ang_y), np.sin(ang_y))
    tab_x = np.where(is_y[:, None], 0.0, val_x).astype(np.float32)  # (C, X)
    tab_y = np.where(is_y[:, None], val_y, 0.0).astype(np.float32)  # (C, Y)
    # Pre-shape so the kernel's broadcast needs no relayout:
    return tab_x[:, :, None], tab_y[:, None, :]   # (C, X, 1), (C, 1, Y)


def positional_encoding_permute_2d(x, org_channels):
    """Pallas equivalent of PositionalEncodingPermute2D(org_channels)(x).

    x: (B, C, X, Y) in NCHW. Returns (B, org_channels, X, Y) in x.dtype.
    """
    b, c, xdim, ydim = x.shape
    assert c == org_channels, "channel dim of x must equal org_channels"
    tab_x, tab_y = _build_tables(org_channels, xdim, ydim)
    bpe = jnp.dtype(x.dtype).itemsize

    def rup(a, m):
        return (a + m - 1) // m * m

    # Per-grid-step VMEM (each buffer double-buffered by the pipeline):
    #   out  block : C * tx * Y * bpe
    #   tabx block : C * rup(tx, 8) * 128 * 4   (size-1 lane dim pads to 128)
    #   taby block : C * 8 * rup(Y, 128) * 4    (constant w.r.t. tx)
    taby_bytes = org_channels * 8 * rup(ydim, 128) * 4

    def step_bytes(tx):
        return (org_channels * tx * ydim * bpe
                + org_channels * rup(tx, 8) * 128 * 4)

    budget = 2 * 1024 * 1024  # ~2 MiB/step -> <~6 MiB double-buffered total
    if xdim <= 8 or step_bytes(xdim) + taby_bytes <= budget:
        tx = xdim                                   # single x-block (legal: == full dim)
    else:
        per_row = org_channels * (ydim * bpe + 128 * 4)
        tx = max(8, ((budget - taby_bytes) // per_row) // 8 * 8)
        tx = min(tx, rup(xdim, 8))
    nx = pl.cdiv(xdim, tx)
    grid = (nx, b)   # batch innermost: table block index constant -> no re-DMA

    cost = pl.CostEstimate(
        flops=b * org_channels * xdim * ydim,        # one add per output element
        transcendentals=0,
        bytes_accessed=(b * org_channels * xdim * ydim * bpe
                        + org_channels * (xdim + ydim) * 4),
    )

    out = pl.pallas_call(
        _penc2d_kernel,
        out_shape=jax.ShapeDtypeStruct((b, org_channels, xdim, ydim), x.dtype),
        grid_spec=pltpu.PrefetchScalarGridSpec(
            num_scalar_prefetch=0,
            grid=grid,
            in_specs=[
                pl.BlockSpec((org_channels, tx, 1), lambda i, bb: (0, i, 0)),
                pl.BlockSpec((org_channels, 1, ydim), lambda i, bb: (0, 0, 0)),
            ],
            out_specs=pl.BlockSpec(
                (1, org_channels, tx, ydim), lambda i, bb: (bb, 0, i, 0)
            ),
        ),
        compiler_params=pltpu.CompilerParams(
            dimension_semantics=("parallel", "parallel"),
        ),
        cost_estimate=cost,
    )(jnp.asarray(tab_x), jnp.asarray(tab_y))
    return out


def _reference_penc(x, org_channels):
    """Pure-JAX port of the PyTorch module for verification."""
    b, c, xdim, ydim = x.shape
    ch_int = int(np.ceil(org_channels / 4) * 2)
    inv_freq = 1.0 / 10000.0 ** (
        jnp.arange(0, ch_int, 2, dtype=jnp.float32) / ch_int
    )
    pos_x = jnp.arange(xdim, dtype=jnp.float32)
    pos_y = jnp.arange(ydim, dtype=jnp.float32)
    sin_inp_x = jnp.einsum("i,j->ij", pos_x, inv_freq)
    sin_inp_y = jnp.einsum("i,j->ij", pos_y, inv_freq)

    def get_emb(s):
        return jnp.stack((jnp.sin(s), jnp.cos(s)), axis=-1).reshape(s.shape[0], -1)

    emb_x = get_emb(sin_inp_x)[:, None, :]  # (X, 1, ch_int)
    emb_y = get_emb(sin_inp_y)[None, :, :]  # (1, Y, ch_int)
    emb = jnp.zeros((xdim, ydim, 2 * ch_int), x.dtype)
    emb = emb.at[:, :, :ch_int].set(
        jnp.broadcast_to(emb_x, (xdim, ydim, ch_int)).astype(x.dtype)
    )
    emb = emb.at[:, :, ch_int : 2 * ch_int].set(
        jnp.broadcast_to(emb_y, (xdim, ydim, ch_int)).astype(x.dtype)
    )
    enc = jnp.broadcast_to(
        emb[None, :, :, :org_channels], (b, xdim, ydim, org_channels)
    )
    return jnp.transpose(enc, (0, 3, 1, 2))  # back to NCHW


if __name__ == "__main__":
    key = jax.random.PRNGKey(0)
    B, C, X, Y = 2, 4, 16, 16
    x = jax.random.normal(key, (B, C, X, Y), dtype=jnp.float32)

    out = jax.block_until_ready(positional_encoding_permute_2d(x, org_channels=C))
    ref = jax.block_until_ready(_reference_penc(x, org_channels=C))

    assert out.shape == (B, C, X, Y)
    assert out.dtype == x.dtype
    np.testing.assert_allclose(np.asarray(out), np.asarray(ref), atol=1e-5, rtol=1e-5)

    print("KERNEL_OK")
</pallas_src>

<mosaic_0001>
module attributes {stable_mosaic.version = 11 : i64} {
  func.func @_penc2d_kernel(%arg0: i32, %arg1: i32, %arg2: memref<4x16x1xf32, #tpu.memory_space<vmem>>, %arg3: memref<4x1x16xf32, #tpu.memory_space<vmem>>, %arg4: memref<1x4x16x16xf32, #tpu.memory_space<vmem>>) attributes {dimension_semantics = [#tpu.dimension_semantics<parallel>, #tpu.dimension_semantics<parallel>], iteration_bounds = array<i64: 1, 2>, scalar_prefetch = 0 : i64, scratch_operands = 0 : i64, tpu.core_type = #tpu.core_type<tc>, window_params = [{transform_indices = @transform_0, window_bounds = array<i64: 4, 16, 1>}, {pipeline_mode = #tpu.pipeline_mode<synchronous>, transform_indices = @transform_1, window_bounds = array<i64: 4, 1, 16>}, {transform_indices = @transform_2, window_bounds = array<i64: 1, 4, 16, 16>}]} {
    %c0 = arith.constant 0 : index
    %c0_0 = arith.constant 0 : index
    %c0_1 = arith.constant 0 : index
    %0 = vector.load %arg2[%c0, %c0_0, %c0_1] : memref<4x16x1xf32, #tpu.memory_space<vmem>>, vector<4x16x1xf32>
    %c0_2 = arith.constant 0 : index
    %c0_3 = arith.constant 0 : index
    %c0_4 = arith.constant 0 : index
    %1 = vector.load %arg3[%c0_2, %c0_3, %c0_4] : memref<4x1x16xf32, #tpu.memory_space<vmem>>, vector<4x1x16xf32>
    %2 = vector.broadcast %0 : vector<4x16x1xf32> to vector<4x16x16xf32>
    %3 = vector.broadcast %1 : vector<4x1x16xf32> to vector<4x16x16xf32>
    %4 = arith.addf %2, %3 : vector<4x16x16xf32>
    %5 = vector.shape_cast %4 : vector<4x16x16xf32> to vector<1x4x16x16xf32>
    %c0_5 = arith.constant 0 : index
    %c0_6 = arith.constant 0 : index
    %c0_7 = arith.constant 0 : index
    %c0_8 = arith.constant 0 : index
    %6 = vector.load %arg4[%c0_5, %c0_6, %c0_7, %c0_8] : memref<1x4x16x16xf32, #tpu.memory_space<vmem>>, vector<1x4x16x16xf32>
    tpu.vector_store %arg4[%c0_5, %c0_6, %c0_7, %c0_8], %5 {strides = array<i32>} : memref<1x4x16x16xf32, #tpu.memory_space<vmem>>, vector<1x4x16x16xf32>,
    return
  }
  func.func @transform_0(%arg0: i32, %arg1: i32) -> (i32, i32, i32) {
    %c0_i32 = arith.constant 0 : i32
    %c0_i32_0 = arith.constant 0 : i32
    %c0_i32_1 = arith.constant 0 : i32
    return %c0_i32, %arg0, %c0_i32_0 : i32, i32, i32
  }
  func.func @transform_1(%arg0: i32, %arg1: i32) -> (i32, i32, i32) {
    %c0_i32 = arith.constant 0 : i32
    %c0_i32_0 = arith.constant 0 : i32
    %c0_i32_1 = arith.constant 0 : i32
    %c0_i32_2 = arith.constant 0 : i32
    return %c0_i32, %c0_i32_0, %c0_i32_1 : i32, i32, i32
  }
  func.func @transform_2(%arg0: i32, %arg1: i32) -> (i32, i32, i32, i32) {
    %c0_i32 = arith.constant 0 : i32
    %c0_i32_0 = arith.constant 0 : i32
    %c0_i32_1 = arith.constant 0 : i32
    return %arg1, %c0_i32, %arg0, %c0_i32_0 : i32, i32, i32, i32
  }
}

</mosaic_0001>

<llo_original>
// kernel: tpu_custom_call.1
$region0: #{tpu_custom_call.1}
  #allocation0 [shape = 'u32[]', space=smem, size = 0x4, offset = 0x4, fixed_abs, tag = 'smem constant byte address 0x4 - core index']
  #allocation1 [shape = 'u32[144,128]{1,0:T(1,128)}', space=vmem, size = 0x12000, scoped, tag = 'internal scratch']
  %s0 = inlined_call_operand.vmem [shape: f32[4,16,1], index: 0, kind: input, shape index: {}]
  %s1 = inlined_call_operand.vmem [shape: f32[4,1,16], index: 1, kind: input, shape index: {}]
  %s2 = inlined_call_operand.hbm [shape: f32[2,4,16,16], index: 2, kind: output, shape index: {}]
  %s3 = sld [smem:[#allocation0]]
  $region41: #{tpu_custom_call.1} parent=0
    _
  %s5 = ssub.s32 1, %s3
  %s6 = scalar_select 0, %s5, %s3
  $region1: #{tpu_custom_call.1} parent=0
    #allocation2 [shape = 'u8[65536]{0}', space=vmem, size = 0x10000, scoped, tag = 'output window, operand 0']
    #allocation3 [shape = 's32[2]{0}', space=sflag, size = 0x8, scoped, tag = 'scoped memory for tpu_custom_call.1']
    %7 = vsyncpa [#allocation3], 0
    %s8 = scalar_lea.sflag [#allocation3], 1
    %9 = vsyncpa %s8, 0
    loop: start=0, step=1, limit=4
    $region2: #{tpu_custom_call.1} parent=1 // loop_pre_header
      _
    $region3: #{tpu_custom_call.1} parent=1 // loop_header
      %s11 = sphi 0, %s15
      %p12 = scmp.ge.s32.totalorder %s11, 4
      %s18 = sphi 0, %s30
      %s19 = sphi 0, %s26
      %s20 = sphi 0, %s18
      %s21 = sphi 0, %s19
      %s22 = sphi 0, %s20
      %s23 = sphi 0, %s21
      %s33 = sphi 0, %s35
      %s36 = sphi 0, %s33
      %s37 = sphi 0, %s36
      %s53 = sphi 0, %s37
      %s57 = sphi 0, %s57
      %s59 = sphi 0, %s57
      %s60 = sphi 0, %s59
      %s74 = sphi 0, %s60
      %s82 = sphi 0, %s84
      %s85 = sphi 0, %s82
      %s86 = sphi 0, %s85
      %s102 = sphi 0, %s86
    $region4: #{tpu_custom_call.1} parent=1 // loop_header_branch
      %14 = sbr.rel (%p12) target = $region8
    $region5: #{tpu_custom_call.1} parent=1 // loop_body
      %s16 = ssub.s32 %s11, 1
      %s17 = ssub.s32 %s11, 2
      %s24 = sadd.s32 1, %s19
      %p25 = scmp.ge.s32.totalorder %s24, 2
      %s26 = scalar_select %p25, 0, %s24
      %s27 = sadd.s32 1, %s18
      %s28 = scalar_select %p25, %s27, %s18
      %p29 = scmp.ge.s32.totalorder %s28, 1
      %s30 = scalar_select %p29, 0, %s28
      %s31 = ssub.s32 %s18, %s30
      %p32 = scmp.eq.s32.totalorder %s31, 0
      %s34 = sadd.s32 %s33, 1
      %s35 = scalar_select %p32, %s33, %s34
      %p38 = pneg %p32
      %p39 = scmp.eq.s32.totalorder %s11, 1
      %p40 = por %p38, %p39
      %p41 = scmp.ne.s32.totalorder %s33, %s36
      %p42 = scmp.eq.s32.totalorder %s11, 0
      %p43 = por %p41, %p42
      %p44 = scmp.ne.s32.totalorder %s33, %s36
      %p45 = scmp.eq.s32.totalorder %s16, 1
      %p46 = por %p44, %p45
      %p47 = scmp.ne.s32.totalorder %s36, %s37
      %p48 = scmp.eq.s32.totalorder %s16, 0
      %p49 = por %p47, %p48
      %p50 = scmp.ne.s32.totalorder %s36, %s37
      %p51 = scmp.eq.s32.totalorder %s17, 1
      %p52 = por %p50, %p51
      %p54 = scmp.ne.s32.totalorder %s37, %s53
      %p55 = scmp.eq.s32.totalorder %s17, 0
      %p56 = por %p54, %p55
      %s58 = sadd.s32 %s57, 1
      %p61 = scmp.eq.s32.totalorder %s11, 1
      %p62 = scmp.ne.s32.totalorder %s57, %s59
      %p63 = scmp.eq.s32.totalorder %s11, 0
      %p64 = por %p62, %p63
      %p65 = scmp.ne.s32.totalorder %s57, %s59
      %p66 = scmp.eq.s32.totalorder %s16, 1
      %p67 = por %p65, %p66
      %p68 = scmp.ne.s32.totalorder %s59, %s60
      %p69 = scmp.eq.s32.totalorder %s16, 0
      %p70 = por %p68, %p69
      %p71 = scmp.ne.s32.totalorder %s59, %s60
      %p72 = scmp.eq.s32.totalorder %s17, 1
      %p73 = por %p71, %p72
      %p75 = scmp.ne.s32.totalorder %s60, %s74
      %p76 = scmp.eq.s32.totalorder %s17, 0
      %p77 = por %p75, %p76
      %s78 = ssub.s32 %s19, %s26
      %s79 = ssub.s32 %s18, %s30
      %s80 = sor.u32 %s78, %s79
      %p81 = scmp.eq.s32.totalorder %s80, 0
      %s83 = sadd.s32 %s82, 1
      %s84 = scalar_select %p81, %s82, %s83
      %p87 = pneg %p81
      %p88 = scmp.eq.s32.totalorder %s11, 1
      %p89 = por %p87, %p88
      %p90 = scmp.ne.s32.totalorder %s82, %s85
      %p91 = scmp.eq.s32.totalorder %s11, 0
      %p92 = por %p90, %p91
      %p93 = scmp.ne.s32.totalorder %s82, %s85
      %p94 = scmp.eq.s32.totalorder %s16, 1
      %p95 = por %p93, %p94
      %p96 = scmp.ne.s32.totalorder %s85, %s86
      %p97 = scmp.eq.s32.totalorder %s16, 0
      %p98 = por %p96, %p97
      %p99 = scmp.ne.s32.totalorder %s85, %s86
      %p100 = scmp.eq.s32.totalorder %s17, 1
      %p101 = por %p99, %p100
      %p103 = scmp.ne.s32.totalorder %s86, %s102
      %p104 = scmp.eq.s32.totalorder %s17, 0
      %p105 = por %p103, %p104
      %p106 = scmp.le.s32.totalorder 1, %s11
      %p107 = scmp.lt.s32.totalorder %s11, 3
      %p108 = pnand %p106, %p107
      %p109 = pneg %p108
      // Predicated region
      $region9: #{tpu_custom_call.1} parent=5 // pred_check
        _
      $region10: #{tpu_custom_call.1} parent=5 // pred_check_branch
        %111 = sbr.rel (%p108) target = $region12
      $region11: #{tpu_custom_call.1} parent=5 // pred_region
        %s112 = ssub.s32 %s11, 1
        // Predicated region
        $region13: #{tpu_custom_call.1} parent=11 // pred_check
          %p113 = pneg %p49
        $region14: #{tpu_custom_call.1} parent=11 // pred_check_branch
          %115 = sbr.rel (%p113) target = $region16
        $region15: #{tpu_custom_call.1} parent=11 // pred_region
          %s116 = smul.u32 2, %s20
          %p117 = scmp.lt.s32.totalorder %s116, 1
          %s118 = scalar_select %p117, %s116, 1
          %s119 = smul.addr %s118, 8
          %s120 = scalar_lea.vmem %s0, %s119
          %s121 = smul.u32 2, %s20
        $region16: #{tpu_custom_call.1} parent=11 // pred_fallthru
          _
        // Predicated region
        $region17: #{tpu_custom_call.1} parent=11 // pred_check
          %p122 = pneg %p70
        $region18: #{tpu_custom_call.1} parent=11 // pred_check_branch
          %124 = sbr.rel (%p122) target = $region20
        $region19: #{tpu_custom_call.1} parent=11 // pred_region
          _
        $region20: #{tpu_custom_call.1} parent=11 // pred_fallthru
          _
      $region12: #{tpu_custom_call.1} parent=5 // pred_fallthru
        _
      %p125 = scmp.lt.s32.totalorder %s11, 2
      // Predicated region
      $region21: #{tpu_custom_call.1} parent=5 // pred_check
        %p126 = pneg %p125
      $region22: #{tpu_custom_call.1} parent=5 // pred_check_branch
        %128 = sbr.rel (%p126) target = $region24
      $region23: #{tpu_custom_call.1} parent=5 // pred_region
        _
      $region24: #{tpu_custom_call.1} parent=5 // pred_fallthru
        _
      %p129 = scmp.le.s32.totalorder 1, %s11
      %p130 = scmp.lt.s32.totalorder %s11, 3
      %p131 = pnand %p129, %p130
      %p132 = pneg %p131
      // Predicated region
      $region25: #{tpu_custom_call.1} parent=5 // pred_check
        _
      $region26: #{tpu_custom_call.1} parent=5 // pred_check_branch
        %134 = sbr.rel (%p131) target = $region28
      $region27: #{tpu_custom_call.1} parent=5 // pred_region
        %s135 = ssub.s32 %s11, 1
        %s136 = smul.u32 2, %s20
        %p137 = scmp.lt.s32.totalorder %s136, 1
        %s138 = scalar_select %p137, %s136, 1
        %s139 = smul.addr %s138, 8
        %s140 = scalar_lea.vmem %s0, %s139
        %p141 = pneg %p49
        %p142 = pneg %p46
        %p143 = pneg %p70
        %p144 = pneg %p67
        %p145 = pneg %p98
        %p146 = pneg %p95
        %s147 = sand.u32 %s85, 1
        %s148 = scalar_lea.sflag [#allocation3], %s147
        %s149 = sand.u32 %s85, 1
        %s150 = smul.addr %s149, 64
        %s151 = scalar_lea.vmem [#allocation2], %s150
        %s152 = smul.u32 2, %s20
        %p153 = scmp.lt.s32.totalorder %s152, 1
        %s154 = scalar_select %p153, %s152, 1
        %s155 = smul.addr %s154, 8
        %s156 = scalar_lea.vmem %s0, %s155
        %s157 = smul.u32 2, %s20
        %s158 = smul.u32 2, %s20
        %v159 = vld [vmem:[%s156] sm:$0xff]
        %v160 = vld [vmem:[%s156 + $0x8] sm:$0xff]
        %v161 = vld [vmem:[%s156 + $0x10] sm:$0xff]
        %v162 = vld [vmem:[%s156 + $0x18] sm:$0xff]
        %v163 = vld [vmem:[%s156 + $0x20] sm:$0xff]
        %v164 = vld [vmem:[%s156 + $0x28] sm:$0xff]
        %v165 = vld [vmem:[%s156 + $0x30] sm:$0xff]
        %v166 = vld [vmem:[%s156 + $0x38] sm:$0xff]
        %v167 = vld [vmem:[%s1] sm:$0x1]
        %v168 = vld [vmem:[%s1 + $0x1] sm:$0x1]
        %v169 = vld [vmem:[%s1 + $0x2] sm:$0x1]
        %v170 = vld [vmem:[%s1 + $0x3] sm:$0x1]
        %172 = vset.pattern.permute.xlu0 0
        %173 = vperm.xlu0 %172, %v159
        %v174 = vpop.permute.xlu0 %173
        %177 = vset.pattern.permute.xlu0 0
        %178 = vperm.xlu0 %177, %v160
        %v179 = vpop.permute.xlu0 %178
        %182 = vset.pattern.permute.xlu0 0
        %183 = vperm.xlu0 %182, %v161
        %v184 = vpop.permute.xlu0 %183
        %187 = vset.pattern.permute.xlu0 0
        %188 = vperm.xlu0 %187, %v162
        %v189 = vpop.permute.xlu0 %188
        %192 = vset.pattern.permute.xlu0 0
        %193 = vperm.xlu0 %192, %v163
        %v194 = vpop.permute.xlu0 %193
        %197 = vset.pattern.permute.xlu0 0
        %198 = vperm.xlu0 %197, %v164
        %v199 = vpop.permute.xlu0 %198
        %202 = vset.pattern.permute.xlu0 0
        %203 = vperm.xlu0 %202, %v165
        %v204 = vpop.permute.xlu0 %203
        %207 = vset.pattern.permute.xlu0 0
        %208 = vperm.xlu0 %207, %v166
        %v209 = vpop.permute.xlu0 %208
        %v215 = vlaneseq
        %v216 = vshrl.u32 %v215, 7
        %v217 = vsub.s32 0, %v216
        %v218 = vrot.slane %v167, %v217
        %v219 = vlaneseq
        %v220 = vshrl.u32 %v219, 7
        %v221 = vsub.s32 0, %v220
        %v222 = vrot.slane %v168, %v221
        %v223 = vlaneseq
        %v224 = vshrl.u32 %v223, 7
        %v225 = vsub.s32 0, %v224
        %v226 = vrot.slane %v169, %v225
        %v227 = vlaneseq
        %v228 = vshrl.u32 %v227, 7
        %v229 = vsub.s32 0, %v228
        %v230 = vrot.slane %v170, %v229
        %v235 = vadd.f32 %v174, %v218
        %v236 = vadd.f32 %v179, %v218
        %v237 = vadd.f32 %v184, %v222
        %v238 = vadd.f32 %v189, %v222
        %v239 = vadd.f32 %v194, %v226
        %v240 = vadd.f32 %v199, %v226
        %v241 = vadd.f32 %v204, %v230
        %v242 = vadd.f32 %v209, %v230
        %vm243 = vcmask 130048
        %244 = vst.msk [vmem:[%s151] sm:$0xff] %vm243, %v235
        %245 = vst.msk [vmem:[%s151 + $0x8] sm:$0xff] %vm243, %v236
        %246 = vst.msk [vmem:[%s151 + $0x10] sm:$0xff] %vm243, %v237
        %247 = vst.msk [vmem:[%s151 + $0x18] sm:$0xff] %vm243, %v238
        %248 = vst.msk [vmem:[%s151 + $0x20] sm:$0xff] %vm243, %v239
        %249 = vst.msk [vmem:[%s151 + $0x28] sm:$0xff] %vm243, %v240
        %250 = vst.msk [vmem:[%s151 + $0x30] sm:$0xff] %vm243, %v241
        %251 = vst.msk [vmem:[%s151 + $0x38] sm:$0xff] %vm243, %v242
        %s252 = sand.u32 %s85, 1
        %s253 = scalar_lea.sflag [#allocation3], %s252
        %s254 = sand.u32 %s85, 1
        %s255 = smul.addr %s254, 64
        %s256 = scalar_lea.vmem [#allocation2], %s255
        // Predicated region
        $region29: #{tpu_custom_call.1} parent=27 // pred_check
          %p257 = pneg %p95
        $region30: #{tpu_custom_call.1} parent=27 // pred_check_branch
          %259 = sbr.rel (%p257) target = $region32
        $region31: #{tpu_custom_call.1} parent=27 // pred_region
          %s260 = smul.u32 2, %s20
          %s262 = ssub.s32 1024, 1024
          %263 = vsyncadd %s253, %s262
          %s264 = smul.addr %s21, 8
          %s265 = sadd.s32 %s260, %s264
          %s266 = smul.addr %s265, 128
          %s267 = scalar_lea.hbm %s2, %s266
          %s268 = sshll.u32 %s256, 4
          %s269 = int_to_ptr.vmem [resolvable:$true] %s268
          %274 = dma.vmem_to_hbm [thread:$0]  %s269, 1024, %s267, %s253, 128, 128, 8
        $region32: #{tpu_custom_call.1} parent=27 // pred_fallthru
          _
      $region28: #{tpu_custom_call.1} parent=5 // pred_fallthru
        _
      %p275 = scmp.le.s32.totalorder 2, %s11
      // Predicated region
      $region33: #{tpu_custom_call.1} parent=5 // pred_check
        %p276 = pneg %p275
      $region34: #{tpu_custom_call.1} parent=5 // pred_check_branch
        %278 = sbr.rel (%p276) target = $region36
      $region35: #{tpu_custom_call.1} parent=5 // pred_region
        %s279 = ssub.s32 %s11, 2
        // Predicated region
        $region37: #{tpu_custom_call.1} parent=35 // pred_check
          %p280 = pneg %p101
        $region38: #{tpu_custom_call.1} parent=35 // pred_check_branch
          %282 = sbr.rel (%p280) target = $region40
        $region39: #{tpu_custom_call.1} parent=35 // pred_region
          %s283 = sand.u32 %s86, 1
          %s284 = scalar_lea.sflag [#allocation3], %s283
          %s285 = sand.u32 %s86, 1
          %s286 = smul.addr %s285, 64
          %s287 = scalar_lea.vmem [#allocation2], %s286
          %288 = dma.done %s284, 1024
        $region40: #{tpu_custom_call.1} parent=35 // pred_fallthru
          _
      $region36: #{tpu_custom_call.1} parent=5 // pred_fallthru
        _
    $region6: #{tpu_custom_call.1} parent=1 // loop_footer
      %s15 = sadd.s32 1, %s11
    $region7: #{tpu_custom_call.1} parent=1 // loop_footer_branch
      %10 = sbr.rel target = $region3
    $region8: #{tpu_custom_call.1} parent=1 // loop_exit
      _
    %289 = vsyncpa [#allocation3], 1
    %s290 = scalar_lea.sflag [#allocation3], 1
    %291 = vsyncpa %s290, 1

</llo_original>
